<compile_context>
chip_gen: v7x
topology: tpu7x:2x2x1
jax: 0.10.0
libtpu: 0.0.40
codegen_flags: <defaults>
</compile_context>

<pallas_src>
import functools

import numpy as np

import jax
import jax.numpy as jnp
from jax import lax
from jax.experimental import pallas as pl
from jax.experimental.pallas import tpu as pltpu


# ---------------------------------------------------------------------------
# Kernels
# ---------------------------------------------------------------------------

def _gather_nll(input_ref, target_ref, num_classes, ignore_index):
    """Per-pixel NLL on the current tile: loss = -input[target], 0 where ignored.

    input_ref : (K, TN, THW) float log-probabilities
    target_ref: (TN, THW)    int32
    returns   : (TN, THW)    float32
    """
    tgt = target_ref[...]
    acc = jnp.zeros(tgt.shape, dtype=jnp.float32)
    # Static unrolled class gather (K is small): pure VPU selects, no one-hot
    # broadcast, no XLU reduction.  The kernel is HBM-read bound, so this
    # select chain hides under the DMA — no further VALU micro-optimization.
    for k in range(num_classes):
        acc = jnp.where(tgt == k, input_ref[k].astype(jnp.float32), acc)
    # Targets outside [0, K) that are not ignore_index yield 0 loss.
    return jnp.where(tgt != ignore_index, -acc, jnp.zeros_like(acc))


def _nll_map_kernel(input_ref, target_ref, out_ref, *, num_classes, ignore_index):
    """Writes the per-pixel NLL map tile (top-k path)."""
    out_ref[...] = _gather_nll(
        input_ref, target_ref, num_classes, ignore_index).astype(out_ref.dtype)


def _nll_sum_kernel(input_ref, target_ref, psum_ref, *, num_classes, ignore_index):
    """Fused keep-all path: per-tile partial sum only (no NLL map writeback)."""
    loss = _gather_nll(input_ref, target_ref, num_classes, ignore_index)
    tile_sum = jnp.sum(jnp.sum(loss, axis=1, keepdims=True),
                       axis=0, keepdims=True)              # (1, 1)
    # Broadcast the scalar across the (8,128) output block; the wrapper reads
    # element [0, 0] of each block.  Output traffic: 4 KiB per ~8 MiB tile.
    psum_ref[...] = jnp.zeros_like(psum_ref) + tile_sum


# ---------------------------------------------------------------------------
# Tiling
# ---------------------------------------------------------------------------

def _divisors(n):
    out = set()
    d = 1
    while d * d <= n:
        if n % d == 0:
            out.add(d)
            out.add(n // d)
        d += 1
    return sorted(out)


def _pick_tiles(B, K, N, HW, *, in_itemsize, tgt_itemsize, out_itemsize,
                total_budget_bytes=24 << 20, min_grid_tiles=8):
    """Pick (TN, THW) block dims for the trailing (N, HW) axes.

    * (8,128) rule: TN multiple of 8 or TN == N; THW multiple of 128 or == HW.
    * Budget covers the FULL double-buffered working set
      (2 * (K*in + tgt + out) bytes/pixel), so small-K configs stay legal on
      v5e and the ~24 MiB target keeps v7x (64 MiB VMEM) comfortable while
      amortizing the ~0.35 us/step grid overhead on v5e/v6e.
    * Keep >= min_grid_tiles grid points so the all-"parallel" grid can shard
      across v7x's two TensorCores and the DMA pipeline has work to overlap.
    """
    thw_cands = sorted({d for d in _divisors(HW) if d % 128 == 0} | {HW})
    tn_cands = sorted({d for d in _divisors(N) if d % 8 == 0} | {N})
    bytes_per_px = 2 * (K * in_itemsize + tgt_itemsize + out_itemsize)

    def fits(tn, thw):
        return tn * thw * bytes_per_px <= total_budget_bytes

    tn, thw = tn_cands[0], thw_cands[0]       # smallest legal tile as fallback
    for cand_tn in tn_cands:
        for cand_thw in thw_cands:
            if fits(cand_tn, cand_thw) and cand_tn * cand_thw > tn * thw:
                tn, thw = cand_tn, cand_thw

    def n_tiles(a, b):
        return B * (N // a) * (HW // b)

    while n_tiles(tn, thw) < min_grid_tiles:
        ti, hi = tn_cands.index(tn), thw_cands.index(thw)
        if ti > 0:
            tn = tn_cands[ti - 1]
        elif hi > 0:
            thw = thw_cands[hi - 1]
        else:
            break
    return tn, thw


def _vmem_limit_bytes(K, TN, THW, in_itemsize, tgt_itemsize, out_itemsize):
    # Double-buffered input/target/output tiles plus slack for Mosaic scratch.
    # Clamp to [32 MiB, 56 MiB]: above the default scoped limit on v6e/v7x,
    # below v7x's 64 MiB physical VMEM per TensorCore (v5e/v6e have 128 MiB).
    working = 2 * (K * in_itemsize + tgt_itemsize + out_itemsize) * TN * THW
    working += 2 * 8 * 128 * 4                 # fused-mean partial-sum blocks
    return int(min(56 << 20, max(32 << 20, working * 3 // 2)))


# ---------------------------------------------------------------------------
# Exact top-k sum without a sort (radix threshold search)
# ---------------------------------------------------------------------------

def _topk_sum_exact(x, k):
    """sum(lax.top_k(x, k)[0]) summed over all rows, with no sort.

    Per row: MSB-first radix binary search for the k-th largest value on the
    order-preserving uint32 encoding of f32, then one threshold-count pass.
    33 streaming compare+reduce passes total; exact up to fp summation order.
    """
    assert x.dtype == jnp.float32 and x.ndim == 2
    rows, cols = x.shape
    assert 0 < k <= cols

    u = lax.bitcast_convert_type(x, jnp.uint32)
    neg = (u & jnp.uint32(0x80000000)) != 0
    key = jnp.where(neg, ~u, u | jnp.uint32(0x80000000))    # monotone f32->u32

    def body(i, kth):
        bit = jnp.uint32(1) << (jnp.uint32(31) - i.astype(jnp.uint32))
        cand = kth | bit
        cnt = jnp.sum((key >= cand).astype(jnp.int32), axis=1, keepdims=True)
        return jnp.where(cnt >= k, cand, kth)

    # kth = k-th largest key per row (always attained by some element).
    kth = lax.fori_loop(0, 32, body, jnp.zeros((rows, 1), jnp.uint32))

    gt = key > kth                                           # strictly above
    cnt_gt = jnp.sum(gt.astype(jnp.int32), axis=1)           # (rows,)
    sum_gt = jnp.sum(jnp.where(gt, x, 0.0), axis=1)          # (rows,)
    kth_flat = kth[:, 0]
    kth_bits = jnp.where((kth_flat & jnp.uint32(0x80000000)) != 0,
                         kth_flat ^ jnp.uint32(0x80000000), ~kth_flat)
    kth_val = lax.bitcast_convert_type(kth_bits, jnp.float32)
    row_sum = sum_gt + (jnp.float32(k) - cnt_gt.astype(jnp.float32)) * kth_val
    return jnp.sum(row_sum)


# ---------------------------------------------------------------------------
# Forward
# ---------------------------------------------------------------------------

def focal_loss(inputs, target, *, top_k, ignore_index, step_percent=0.0):
    """JAX/Pallas equivalent of FocalLoss.forward.

    inputs : (B, K, N, H, W) float log-probabilities
    target : (B, N, H, W)    integer class ids (ignore_index allowed)
    """
    B, K, N, H, W = inputs.shape
    step_percent = min(step_percent, 1.0)
    HW = H * W

    # Contiguous reshapes only — no transpose copy; the class gather reads
    # straight from the (B, K, N, HW) layout inside the kernel.
    x = inputs.reshape(B, K, N, HW)
    tgt = target.reshape(B, N, HW).astype(jnp.int32)

    in_isz = x.dtype.itemsize
    tgt_isz = tgt.dtype.itemsize

    n_pixels = HW
    n_top_k_pixels = int(step_percent * (top_k * n_pixels)
                         + (1.0 - step_percent) * n_pixels)

    common = dict(num_classes=K, ignore_index=ignore_index)

    if n_top_k_pixels >= n_pixels:
        # Keep-all path (e.g. step_percent == 0): top_k over every pixel then
        # mean == plain mean.  Fused partial sums — the NLL map never hits HBM.
        TN, THW = _pick_tiles(B, K, N, HW, in_itemsize=in_isz,
                              tgt_itemsize=tgt_isz, out_itemsize=0)
        NT, TT = N // TN, HW // THW
        grid = (B, NT, TT)
        psums = pl.pallas_call(
            functools.partial(_nll_sum_kernel, **common),
            out_shape=jax.ShapeDtypeStruct((B, NT, TT, 8, 128), jnp.float32),
            grid=grid,
            in_specs=[
                pl.BlockSpec((pl.Squeezed(), K, TN, THW),
                             lambda b, n, t: (b, 0, n, t)),
                pl.BlockSpec((pl.Squeezed(), TN, THW),
                             lambda b, n, t: (b, n, t)),
            ],
            out_specs=pl.BlockSpec(
                (pl.Squeezed(), pl.Squeezed(), pl.Squeezed(), 8, 128),
                lambda b, n, t: (b, n, t, 0, 0)),
            compiler_params=pltpu.CompilerParams(
                dimension_semantics=("parallel", "parallel", "parallel"),
                vmem_limit_bytes=_vmem_limit_bytes(K, TN, THW, in_isz, tgt_isz, 0)),
        )(x, tgt)
        return jnp.sum(psums[:, :, :, 0, 0]) / jnp.float32(B * N * HW)

    if n_top_k_pixels <= 0:
        # torch.topk(k=0) -> empty tensor; torch.mean(empty) == nan.
        return jnp.array(jnp.nan, dtype=jnp.float32)

    # Top-k path: per-pixel NLL map from the Pallas kernel, then an exact
    # sort-free top-k mean (radix threshold search) instead of lax.top_k.
    TN, THW = _pick_tiles(B, K, N, HW, in_itemsize=in_isz,
                          tgt_itemsize=tgt_isz, out_itemsize=4)
    grid = (B, N // TN, HW // THW)
    nll = pl.pallas_call(
        functools.partial(_nll_map_kernel, **common),
        out_shape=jax.ShapeDtypeStruct((B, N, HW), jnp.float32),
        grid=grid,
        in_specs=[
            pl.BlockSpec((pl.Squeezed(), K, TN, THW),
                         lambda b, n, t: (b, 0, n, t)),
            pl.BlockSpec((pl.Squeezed(), TN, THW),
                         lambda b, n, t: (b, n, t)),
        ],
        out_specs=pl.BlockSpec((pl.Squeezed(), TN, THW),
                               lambda b, n, t: (b, n, t)),
        compiler_params=pltpu.CompilerParams(
            dimension_semantics=("parallel", "parallel", "parallel"),
            vmem_limit_bytes=_vmem_limit_bytes(K, TN, THW, in_isz, tgt_isz, 4)),
    )(x, tgt)

    total = _topk_sum_exact(nll.reshape(B * N, HW), n_top_k_pixels)
    return total / jnp.float32(B * N * n_top_k_pixels)


# ---------------------------------------------------------------------------
# Pure-JAX reference (mirrors the PyTorch module, uses lax.top_k)
# ---------------------------------------------------------------------------

def _focal_loss_ref(inputs, target, *, top_k, ignore_index, step_percent):
    B, K, N, H, W = inputs.shape
    step_percent = min(step_percent, 1.0)
    x = jnp.transpose(inputs, (0, 2, 1, 3, 4)).reshape(B * N, K, H * W)
    t = target.reshape(B * N, H * W)
    safe_t = jnp.clip(t, 0, K - 1)
    gathered = jnp.take_along_axis(x, safe_t[:, None, :], axis=1)[:, 0, :]
    nll = jnp.where(t == ignore_index, 0.0, -gathered)
    n_pixels = H * W
    k = int(step_percent * (top_k * n_pixels) + (1.0 - step_percent) * n_pixels)
    top_vals, _ = lax.top_k(nll, k)
    return jnp.mean(top_vals)


if __name__ == "__main__":
    TOP_K = 0.7
    IGNORE_INDEX = 255

    # forward(): input (B, K, N, H, W), target (B, N, H, W).
    B, K, N, H, W = 2, 4, 2, 16, 16

    key = jax.random.PRNGKey(0)
    k_logits, k_tgt, k_ign = jax.random.split(key, 3)

    logits = jax.random.normal(k_logits, (B, K, N, H, W), dtype=jnp.float32)
    log_probs = jax.nn.log_softmax(logits, axis=1)      # nll_loss expects log-probs
    target = jax.random.randint(k_tgt, (B, N, H, W), 0, K, dtype=jnp.int32)
    ign_mask = jax.random.uniform(k_ign, (B, N, H, W)) < 0.1
    target = jnp.where(ign_mask, IGNORE_INDEX, target)

    results = {}
    for sp in (0.0, 0.5, 1.0):                          # fused-mean + two top-k cases
        results[sp] = focal_loss(log_probs, target, top_k=TOP_K,
                                 ignore_index=IGNORE_INDEX, step_percent=sp)
    jax.block_until_ready(results)

    for sp, got in results.items():
        want = _focal_loss_ref(log_probs, target, top_k=TOP_K,
                               ignore_index=IGNORE_INDEX, step_percent=sp)
        np.testing.assert_allclose(np.asarray(got), np.asarray(want),
                                   rtol=1e-4, atol=1e-5)

    print("KERNEL_OK")
</pallas_src>

<mosaic_0001>
module attributes {stable_mosaic.version = 11 : i64} {
  func.func @_nll_sum_kernel(%arg0: i32, %arg1: i32, %arg2: i32, %arg3: memref<1x4x2x128xf32, #tpu.memory_space<vmem>>, %arg4: memref<1x2x128xi32, #tpu.memory_space<vmem>>, %arg5: memref<1x1x1x8x128xf32, #tpu.memory_space<vmem>>) attributes {dimension_semantics = [#tpu.dimension_semantics<parallel>, #tpu.dimension_semantics<parallel>, #tpu.dimension_semantics<parallel>], iteration_bounds = array<i64: 2, 1, 2>, scalar_prefetch = 0 : i64, scratch_operands = 0 : i64, tpu.core_type = #tpu.core_type<tc>, window_params = [{transform_indices = @transform_0, window_bounds = array<i64: 1, 4, 2, 128>}, {transform_indices = @transform_1, window_bounds = array<i64: 1, 2, 128>}, {transform_indices = @transform_2, window_bounds = array<i64: 1, 1, 1, 8, 128>}]} {
    %c0 = arith.constant 0 : index
    %c0_0 = arith.constant 0 : index
    %c0_1 = arith.constant 0 : index
    %0 = vector.load %arg4[%c0, %c0_0, %c0_1] : memref<1x2x128xi32, #tpu.memory_space<vmem>>, vector<1x2x128xi32>
    %1 = vector.shape_cast %0 : vector<1x2x128xi32> to vector<2x128xi32>
    %cst = arith.constant 0.000000e+00 : f32
    %2 = vector.broadcast %cst : f32 to vector<2x128xf32>
    %c0_i32 = arith.constant 0 : i32
    %3 = vector.broadcast %c0_i32 : i32 to vector<2x128xi32>
    %4 = arith.cmpi eq, %1, %3 : vector<2x128xi32>
    %c0_2 = arith.constant 0 : index
    %c0_3 = arith.constant 0 : index
    %c0_4 = arith.constant 0 : index
    %c0_5 = arith.constant 0 : index
    %5 = vector.load %arg3[%c0_2, %c0_3, %c0_4, %c0_5] : memref<1x4x2x128xf32, #tpu.memory_space<vmem>>, vector<1x1x2x128xf32>
    %6 = vector.shape_cast %5 : vector<1x1x2x128xf32> to vector<2x128xf32>
    %7 = arith.select %4, %6, %2 : vector<2x128xi1>, vector<2x128xf32>
    %c1_i32 = arith.constant 1 : i32
    %8 = vector.broadcast %c1_i32 : i32 to vector<2x128xi32>
    %9 = arith.cmpi eq, %1, %8 : vector<2x128xi32>
    %c0_6 = arith.constant 0 : index
    %c1 = arith.constant 1 : index
    %c0_7 = arith.constant 0 : index
    %c0_8 = arith.constant 0 : index
    %10 = vector.load %arg3[%c0_6, %c1, %c0_7, %c0_8] : memref<1x4x2x128xf32, #tpu.memory_space<vmem>>, vector<1x1x2x128xf32>
    %11 = vector.shape_cast %10 : vector<1x1x2x128xf32> to vector<2x128xf32>
    %12 = arith.select %9, %11, %7 : vector<2x128xi1>, vector<2x128xf32>
    %c2_i32 = arith.constant 2 : i32
    %13 = vector.broadcast %c2_i32 : i32 to vector<2x128xi32>
    %14 = arith.cmpi eq, %1, %13 : vector<2x128xi32>
    %c0_9 = arith.constant 0 : index
    %c2 = arith.constant 2 : index
    %c0_10 = arith.constant 0 : index
    %c0_11 = arith.constant 0 : index
    %15 = vector.load %arg3[%c0_9, %c2, %c0_10, %c0_11] : memref<1x4x2x128xf32, #tpu.memory_space<vmem>>, vector<1x1x2x128xf32>
    %16 = vector.shape_cast %15 : vector<1x1x2x128xf32> to vector<2x128xf32>
    %17 = arith.select %14, %16, %12 : vector<2x128xi1>, vector<2x128xf32>
    %c3_i32 = arith.constant 3 : i32
    %18 = vector.broadcast %c3_i32 : i32 to vector<2x128xi32>
    %19 = arith.cmpi eq, %1, %18 : vector<2x128xi32>
    %c0_12 = arith.constant 0 : index
    %c3 = arith.constant 3 : index
    %c0_13 = arith.constant 0 : index
    %c0_14 = arith.constant 0 : index
    %20 = vector.load %arg3[%c0_12, %c3, %c0_13, %c0_14] : memref<1x4x2x128xf32, #tpu.memory_space<vmem>>, vector<1x1x2x128xf32>
    %21 = vector.shape_cast %20 : vector<1x1x2x128xf32> to vector<2x128xf32>
    %22 = arith.select %19, %21, %17 : vector<2x128xi1>, vector<2x128xf32>
    %c255_i32 = arith.constant 255 : i32
    %23 = vector.broadcast %c255_i32 : i32 to vector<2x128xi32>
    %24 = arith.cmpi ne, %1, %23 : vector<2x128xi32>
    %cst_15 = arith.constant 0.000000e+00 : f32
    %25 = vector.broadcast %cst_15 : f32 to vector<2x128xf32>
    %26 = arith.subf %25, %22 : vector<2x128xf32>
    %cst_16 = arith.constant 0.000000e+00 : f32
    %27 = vector.broadcast %cst_16 : f32 to vector<2x128xf32>
    %28 = arith.select %24, %26, %27 : vector<2x128xi1>, vector<2x128xf32>
    %cst_17 = arith.constant dense<0.000000e+00> : vector<2xf32>
    %29 = vector.multi_reduction <add>, %28, %cst_17 [1] : vector<2x128xf32> to vector<2xf32>
    %30 = vector.shape_cast %29 : vector<2xf32> to vector<2x1xf32>
    %cst_18 = arith.constant dense<0.000000e+00> : vector<1xf32>
    %31 = vector.multi_reduction <add>, %30, %cst_18 [0] : vector<2x1xf32> to vector<1xf32>
    %32 = vector.shape_cast %31 : vector<1xf32> to vector<1x1xf32>
    %cst_19 = arith.constant 0.000000e+00 : f32
    %33 = vector.broadcast %cst_19 : f32 to vector<8x128xf32>
    %34 = vector.broadcast %32 : vector<1x1xf32> to vector<8x128xf32>
    %35 = arith.addf %33, %34 : vector<8x128xf32>
    %c0_20 = arith.constant 0 : index
    %c0_21 = arith.constant 0 : index
    %c0_22 = arith.constant 0 : index
    %c0_23 = arith.constant 0 : index
    %c0_24 = arith.constant 0 : index
    %36 = vector.load %arg5[%c0_20, %c0_21, %c0_22, %c0_23, %c0_24] : memref<1x1x1x8x128xf32, #tpu.memory_space<vmem>>, vector<1x1x1x8x128xf32>
    %37 = vector.shape_cast %36 : vector<1x1x1x8x128xf32> to vector<8x128xf32>
    %38 = vector.shape_cast %35 : vector<8x128xf32> to vector<1x1x1x8x128xf32>
    tpu.vector_store %arg5[%c0_20, %c0_21, %c0_22, %c0_23, %c0_24], %38 {strides = array<i32>} : memref<1x1x1x8x128xf32, #tpu.memory_space<vmem>>, vector<1x1x1x8x128xf32>,
    return
  }
  func.func @transform_0(%arg0: i32, %arg1: i32, %arg2: i32) -> (i32, i32, i32, i32) {
    %c0_i32 = arith.constant 0 : i32
    %c0_i32_0 = arith.constant 0 : i32
    return %arg0, %c0_i32, %arg1, %arg2 : i32, i32, i32, i32
  }
  func.func @transform_1(%arg0: i32, %arg1: i32, %arg2: i32) -> (i32, i32, i32) {
    %c0_i32 = arith.constant 0 : i32
    return %arg0, %arg1, %arg2 : i32, i32, i32
  }
  func.func @transform_2(%arg0: i32, %arg1: i32, %arg2: i32) -> (i32, i32, i32, i32, i32) {
    %c0_i32 = arith.constant 0 : i32
    %c0_i32_0 = arith.constant 0 : i32
    %c0_i32_1 = arith.constant 0 : i32
    return %arg0, %arg1, %arg2, %c0_i32, %c0_i32_0 : i32, i32, i32, i32, i32
  }
}

</mosaic_0001>

<llo_original>
// kernel: tpu_custom_call.1
$region0: #{tpu_custom_call.1}
  #allocation0 [shape = 'u32[]', space=smem, size = 0x4, offset = 0x4, fixed_abs, tag = 'smem constant byte address 0x4 - core index']
  #allocation1 [shape = 'u32[144,128]{1,0:T(1,128)}', space=vmem, size = 0x12000, scoped, tag = 'internal scratch']
  %s0 = inlined_call_operand.hbm [shape: f32[2,4,2,256], index: 0, kind: input, shape index: {}]
  %s1 = inlined_call_operand.hbm [shape: s32[2,2,256], index: 1, kind: input, shape index: {}]
  %s2 = inlined_call_operand.hbm [shape: f32[2,1,2,8,128], index: 2, kind: output, shape index: {}]
  %s3 = sld [smem:[#allocation0]]
  $region49: #{tpu_custom_call.1} parent=0
    _
  %s5 = ssub.s32 1, %s3
  %s6 = scalar_select 0, %s5, %s3
  $region1: #{tpu_custom_call.1} parent=0
    #allocation2 [shape = 'u8[8192]{0}', space=vmem, size = 0x2000, scoped, tag = 'input window, operand 0']
    #allocation3 [shape = 's32[2]{0}', space=sflag, size = 0x8, scoped, tag = 'scoped memory for tpu_custom_call.1']
    #allocation4 [shape = 's32[2]{0}', space=sflag, size = 0x8, scoped, tag = 'scoped memory for tpu_custom_call.1']
    #allocation5 [shape = 'u8[2048]{0}', space=vmem, size = 0x800, scoped, tag = 'input window, operand 1']
    #allocation6 [shape = 's32[2]{0}', space=sflag, size = 0x8, scoped, tag = 'scoped memory for tpu_custom_call.1']
    #allocation7 [shape = 'u8[8192]{0}', space=vmem, size = 0x2000, scoped, tag = 'output window, operand 0']
    %7 = vsyncpa [#allocation3], 0
    %s8 = scalar_lea.sflag [#allocation3], 1
    %9 = vsyncpa %s8, 0
    %10 = vsyncpa [#allocation6], 0
    %s11 = scalar_lea.sflag [#allocation6], 1
    %12 = vsyncpa %s11, 0
    %13 = vsyncpa [#allocation4], 0
    %s14 = scalar_lea.sflag [#allocation4], 1
    %15 = vsyncpa %s14, 0
    loop: start=0, step=1, limit=6
    $region2: #{tpu_custom_call.1} parent=1 // loop_pre_header
      _
    $region3: #{tpu_custom_call.1} parent=1 // loop_header
      %s17 = sphi 0, %s21
      %p18 = scmp.ge.s32.totalorder %s17, 6
      %s24 = sphi 0, %s43
      %s25 = sphi 0, %s39
      %s26 = sphi 0, %s35
      %s27 = sphi 0, %s24
      %s28 = sphi 0, %s25
      %s29 = sphi 0, %s26
      %s30 = sphi 0, %s27
      %s31 = sphi 0, %s28
      %s32 = sphi 0, %s29
      %s50 = sphi 0, %s52
      %s53 = sphi 0, %s50
      %s54 = sphi 0, %s53
      %s70 = sphi 0, %s54
      %s80 = sphi 0, %s82
      %s83 = sphi 0, %s80
      %s84 = sphi 0, %s83
      %s100 = sphi 0, %s84
      %s110 = sphi 0, %s112
      %s113 = sphi 0, %s110
      %s114 = sphi 0, %s113
      %s130 = sphi 0, %s114
    $region4: #{tpu_custom_call.1} parent=1 // loop_header_branch
      %20 = sbr.rel (%p18) target = $region8
    $region5: #{tpu_custom_call.1} parent=1 // loop_body
      %s22 = ssub.s32 %s17, 1
      %s23 = ssub.s32 %s17, 2
      %s33 = sadd.s32 1, %s26
      %p34 = scmp.ge.s32.totalorder %s33, 2
      %s35 = scalar_select %p34, 0, %s33
      %s36 = sadd.s32 1, %s25
      %s37 = scalar_select %p34, %s36, %s25
      %p38 = scmp.ge.s32.totalorder %s37, 1
      %s39 = scalar_select %p38, 0, %s37
      %s40 = sadd.s32 1, %s24
      %s41 = scalar_select %p38, %s40, %s24
      %p42 = scmp.ge.s32.totalorder %s41, 2
      %s43 = scalar_select %p42, 0, %s41
      %s44 = ssub.s32 %s24, %s43
      %s45 = ssub.s32 %s25, %s39
      %s46 = sor.u32 %s44, %s45
      %s47 = ssub.s32 %s26, %s35
      %s48 = sor.u32 %s46, %s47
      %p49 = scmp.eq.s32.totalorder %s48, 0
      %s51 = sadd.s32 %s50, 1
      %s52 = scalar_select %p49, %s50, %s51
      %p55 = pneg %p49
      %p56 = scmp.eq.s32.totalorder %s17, 3
      %p57 = por %p55, %p56
      %p58 = scmp.ne.s32.totalorder %s50, %s53
      %p59 = scmp.eq.s32.totalorder %s17, 0
      %p60 = por %p58, %p59
      %p61 = scmp.ne.s32.totalorder %s50, %s53
      %p62 = scmp.eq.s32.totalorder %s22, 3
      %p63 = por %p61, %p62
      %p64 = scmp.ne.s32.totalorder %s53, %s54
      %p65 = scmp.eq.s32.totalorder %s22, 0
      %p66 = por %p64, %p65
      %p67 = scmp.ne.s32.totalorder %s53, %s54
      %p68 = scmp.eq.s32.totalorder %s23, 3
      %p69 = por %p67, %p68
      %p71 = scmp.ne.s32.totalorder %s54, %s70
      %p72 = scmp.eq.s32.totalorder %s23, 0
      %p73 = por %p71, %p72
      %s74 = ssub.s32 %s24, %s43
      %s75 = ssub.s32 %s25, %s39
      %s76 = sor.u32 %s74, %s75
      %s77 = ssub.s32 %s26, %s35
      %s78 = sor.u32 %s76, %s77
      %p79 = scmp.eq.s32.totalorder %s78, 0
      %s81 = sadd.s32 %s80, 1
      %s82 = scalar_select %p79, %s80, %s81
      %p85 = pneg %p79
      %p86 = scmp.eq.s32.totalorder %s17, 3
      %p87 = por %p85, %p86
      %p88 = scmp.ne.s32.totalorder %s80, %s83
      %p89 = scmp.eq.s32.totalorder %s17, 0
      %p90 = por %p88, %p89
      %p91 = scmp.ne.s32.totalorder %s80, %s83
      %p92 = scmp.eq.s32.totalorder %s22, 3
      %p93 = por %p91, %p92
      %p94 = scmp.ne.s32.totalorder %s83, %s84
      %p95 = scmp.eq.s32.totalorder %s22, 0
      %p96 = por %p94, %p95
      %p97 = scmp.ne.s32.totalorder %s83, %s84
      %p98 = scmp.eq.s32.totalorder %s23, 3
      %p99 = por %p97, %p98
      %p101 = scmp.ne.s32.totalorder %s84, %s100
      %p102 = scmp.eq.s32.totalorder %s23, 0
      %p103 = por %p101, %p102
      %s104 = ssub.s32 %s24, %s43
      %s105 = ssub.s32 %s25, %s39
      %s106 = sor.u32 %s104, %s105
      %s107 = ssub.s32 %s26, %s35
      %s108 = sor.u32 %s106, %s107
      %p109 = scmp.eq.s32.totalorder %s108, 0
      %s111 = sadd.s32 %s110, 1
      %s112 = scalar_select %p109, %s110, %s111
      %p115 = pneg %p109
      %p116 = scmp.eq.s32.totalorder %s17, 3
      %p117 = por %p115, %p116
      %p118 = scmp.ne.s32.totalorder %s110, %s113
      %p119 = scmp.eq.s32.totalorder %s17, 0
      %p120 = por %p118, %p119
      %p121 = scmp.ne.s32.totalorder %s110, %s113
      %p122 = scmp.eq.s32.totalorder %s22, 3
      %p123 = por %p121, %p122
      %p124 = scmp.ne.s32.totalorder %s113, %s114
      %p125 = scmp.eq.s32.totalorder %s22, 0
      %p126 = por %p124, %p125
      %p127 = scmp.ne.s32.totalorder %s113, %s114
      %p128 = scmp.eq.s32.totalorder %s23, 3
      %p129 = por %p127, %p128
      %p131 = scmp.ne.s32.totalorder %s114, %s130
      %p132 = scmp.eq.s32.totalorder %s23, 0
      %p133 = por %p131, %p132
      %p134 = scmp.le.s32.totalorder 1, %s17
      %p135 = scmp.lt.s32.totalorder %s17, 5
      %p136 = pnand %p134, %p135
      %p137 = pneg %p136
      // Predicated region
      $region9: #{tpu_custom_call.1} parent=5 // pred_check
        _
      $region10: #{tpu_custom_call.1} parent=5 // pred_check_branch
        %139 = sbr.rel (%p136) target = $region12
      $region11: #{tpu_custom_call.1} parent=5 // pred_region
        %s140 = ssub.s32 %s17, 1
      $region12: #{tpu_custom_call.1} parent=5 // pred_fallthru
        _
      %p141 = scmp.lt.s32.totalorder %s17, 4
      // Predicated region
      $region13: #{tpu_custom_call.1} parent=5 // pred_check
        %p142 = pneg %p141
      $region14: #{tpu_custom_call.1} parent=5 // pred_check_branch
        %144 = sbr.rel (%p142) target = $region16
      $region15: #{tpu_custom_call.1} parent=5 // pred_region
        // Predicated region
        $region17: #{tpu_custom_call.1} parent=15 // pred_check
          %p145 = pneg %p60
        $region18: #{tpu_custom_call.1} parent=15 // pred_check_branch
          %147 = sbr.rel (%p145) target = $region20
        $region19: #{tpu_custom_call.1} parent=15 // pred_region
          %s148 = sand.u32 %s50, 1
          %s149 = scalar_lea.sflag [#allocation3], %s148
          %s150 = sand.u32 %s50, 1
          %s151 = smul.addr %s150, 8
          %s152 = scalar_lea.vmem [#allocation2], %s151
          %s154 = ssub.s32 128, 128
          %155 = vsyncadd %s149, %s154
          %s156 = smul.addr %s25, 2
          %s157 = sadd.s32 %s26, %s156
          %s158 = smul.addr %s24, 8
          %s159 = sadd.s32 %s157, %s158
          %s160 = smul.addr %s159, 32
          %s161 = scalar_lea.hbm %s0, %s160
          %s162 = sshll.u32 %s152, 4
          %s163 = int_to_ptr.vmem [resolvable:$true] %s162
          %168 = dma.hbm_to_vmem [thread:$0]  %s161, 128, %s163, %s149, 64, 32, 2
        $region20: #{tpu_custom_call.1} parent=15 // pred_fallthru
          _
        // Predicated region
        $region21: #{tpu_custom_call.1} parent=15 // pred_check
          %p169 = pneg %p90
        $region22: #{tpu_custom_call.1} parent=15 // pred_check_branch
          %171 = sbr.rel (%p169) target = $region24
        $region23: #{tpu_custom_call.1} parent=15 // pred_region
          %s172 = sand.u32 %s80, 1
          %s173 = scalar_lea.sflag [#allocation6], %s172
          %s174 = sand.u32 %s80, 1
          %s175 = smul.addr %s174, 2
          %s176 = scalar_lea.vmem [#allocation5], %s175
          %s178 = ssub.s32 32, 32
          %179 = vsyncadd %s173, %s178
          %s180 = smul.addr %s25, 2
          %s181 = sadd.s32 %s26, %s180
          %s182 = smul.addr %s24, 2
          %s183 = sadd.s32 %s181, %s182
          %s184 = smul.addr %s183, 32
          %s185 = scalar_lea.hbm %s1, %s184
          %s187 = sshll.u32 %s176, 4
          %s188 = int_to_ptr.vmem [resolvable:$true] %s187
          %190 = dma.hbm_to_vmem [thread:$0]  %s185, 32, %s188, %s173
        $region24: #{tpu_custom_call.1} parent=15 // pred_fallthru
          _
      $region16: #{tpu_custom_call.1} parent=5 // pred_fallthru
        _
      %p191 = scmp.le.s32.totalorder 1, %s17
      %p192 = scmp.lt.s32.totalorder %s17, 5
      %p193 = pnand %p191, %p192
      %p194 = pneg %p193
      // Predicated region
      $region25: #{tpu_custom_call.1} parent=5 // pred_check
        _
      $region26: #{tpu_custom_call.1} parent=5 // pred_check_branch
        %196 = sbr.rel (%p193) target = $region28
      $region27: #{tpu_custom_call.1} parent=5 // pred_region
        %s197 = ssub.s32 %s17, 1
        %s198 = sand.u32 %s53, 1
        %s199 = scalar_lea.sflag [#allocation3], %s198
        %s200 = sand.u32 %s53, 1
        %s201 = smul.addr %s200, 8
        %s202 = scalar_lea.vmem [#allocation2], %s201
        // Predicated region
        $region29: #{tpu_custom_call.1} parent=27 // pred_check
          %p203 = pneg %p66
        $region30: #{tpu_custom_call.1} parent=27 // pred_check_branch
          %205 = sbr.rel (%p203) target = $region32
        $region31: #{tpu_custom_call.1} parent=27 // pred_region
          %206 = dma.done %s199, 128
        $region32: #{tpu_custom_call.1} parent=27 // pred_fallthru
          _
        %s207 = sand.u32 %s83, 1
        %s208 = scalar_lea.sflag [#allocation6], %s207
        %s209 = sand.u32 %s83, 1
        %s210 = smul.addr %s209, 2
        %s211 = scalar_lea.vmem [#allocation5], %s210
        // Predicated region
        $region33: #{tpu_custom_call.1} parent=27 // pred_check
          %p212 = pneg %p96
        $region34: #{tpu_custom_call.1} parent=27 // pred_check_branch
          %214 = sbr.rel (%p212) target = $region36
        $region35: #{tpu_custom_call.1} parent=27 // pred_region
          %215 = dma.done %s208, 32
        $region36: #{tpu_custom_call.1} parent=27 // pred_fallthru
          _
        %s216 = sand.u32 %s53, 1
        %s217 = scalar_lea.sflag [#allocation3], %s216
        %s218 = sand.u32 %s53, 1
        %s219 = smul.addr %s218, 8
        %s220 = scalar_lea.vmem [#allocation2], %s219
        %p221 = pneg %p66
        %p222 = pneg %p63
        %s223 = sand.u32 %s83, 1
        %s224 = scalar_lea.sflag [#allocation6], %s223
        %s225 = sand.u32 %s83, 1
        %s226 = smul.addr %s225, 2
        %s227 = scalar_lea.vmem [#allocation5], %s226
        %p228 = pneg %p96
        %p229 = pneg %p93
        %p230 = pneg %p126
        %p231 = pneg %p123
        %s232 = sand.u32 %s113, 1
        %s233 = scalar_lea.sflag [#allocation4], %s232
        %s234 = sand.u32 %s113, 1
        %s235 = smul.addr %s234, 8
        %s236 = scalar_lea.vmem [#allocation7], %s235
        %v237 = vld [vmem:[%s211] sm:$0x3]
        %vm238 = vcmp.eq.s32.totalorder %v237, 0
        %v239 = vld [vmem:[%s202] sm:$0x3]
        %v240 = vsel %vm238, %v239, 0.0
        %vm241 = vcmp.eq.s32.totalorder %v237, 1
        %s242 = scalar_lea.vmem %s202, 2 [#allocation2]
        %v243 = vld [vmem:[%s242] sm:$0x3]
        %v244 = vsel %vm241, %v243, %v240
        %vm245 = vcmp.eq.s32.totalorder %v237, 2
        %s246 = scalar_lea.vmem %s202, 4 [#allocation2]
        %v247 = vld [vmem:[%s246] sm:$0x3]
        %v248 = vsel %vm245, %v247, %v244
        %vm249 = vcmp.eq.s32.totalorder %v237, 3
        %s250 = scalar_lea.vmem %s202, 6 [#allocation2]
        %v251 = vld [vmem:[%s250] sm:$0x3]
        %v252 = vsel %vm249, %v251, %v248
        %vm253 = vcmp.ne.s32.totalorder %v237, 255
        %v254 = vsub.f32 0.0, %v252
        %v255 = vsel %vm253, %v254, 0.0
        %vm256 = vcmask 1041408
        %v257 = vsel %vm256, %v255, 0.0
        %258 = vadd.xlane.f32.xlu0 %v257
        %v259 = vpop.xlane.xlu0 %258
        %v260 = vsel %vm256, %v259, 0.0
        %v261 = vrot.slane %v260, 4
        %v262 = vadd.f32 %v260, %v261
        %v263 = vrot.slane %v262, 2
        %v264 = vadd.f32 %v262, %v263
        %v265 = vrot.slane %v264, 1
        %v266 = vadd.f32 %v264, %v265
        %v267 = vadd.f32 %v266, 0.0
        %268 = vst [vmem:[%s236] sm:$0xff] %v267
        %s269 = sand.u32 %s113, 1
        %s270 = scalar_lea.sflag [#allocation4], %s269
        %s271 = sand.u32 %s113, 1
        %s272 = smul.addr %s271, 8
        %s273 = scalar_lea.vmem [#allocation7], %s272
        // Predicated region
        $region37: #{tpu_custom_call.1} parent=27 // pred_check
          %p274 = pneg %p123
        $region38: #{tpu_custom_call.1} parent=27 // pred_check_branch
          %276 = sbr.rel (%p274) target = $region40
        $region39: #{tpu_custom_call.1} parent=27 // pred_region
          %s278 = ssub.s32 128, 128
          %279 = vsyncadd %s270, %s278
          %s280 = smul.addr %s28, 2
          %s281 = sadd.s32 %s29, %s280
          %s282 = smul.addr %s27, 2
          %s283 = sadd.s32 %s281, %s282
          %s284 = smul.addr %s283, 128
          %s285 = scalar_lea.hbm %s2, %s284
          %s287 = sshll.u32 %s273, 4
          %s288 = int_to_ptr.vmem [resolvable:$true] %s287
          %290 = dma.vmem_to_hbm [thread:$0]  %s288, 128, %s285, %s270
        $region40: #{tpu_custom_call.1} parent=27 // pred_fallthru
          _
      $region28: #{tpu_custom_call.1} parent=5 // pred_fallthru
        _
      %p291 = scmp.le.s32.totalorder 2, %s17
      // Predicated region
      $region41: #{tpu_custom_call.1} parent=5 // pred_check
        %p292 = pneg %p291
      $region42: #{tpu_custom_call.1} parent=5 // pred_check_branch
        %294 = sbr.rel (%p292) target = $region44
      $region43: #{tpu_custom_call.1} parent=5 // pred_region
        %s295 = ssub.s32 %s17, 2
        // Predicated region
        $region45: #{tpu_custom_call.1} parent=43 // pred_check
          %p296 = pneg %p129
        $region46: #{tpu_custom_call.1} parent=43 // pred_check_branch
          %298 = sbr.rel (%p296) target = $region48
        $region47: #{tpu_custom_call.1} parent=43 // pred_region
          %s299 = sand.u32 %s114, 1
          %s300 = scalar_lea.sflag [#allocation4], %s299
          %s301 = sand.u32 %s114, 1
          %s302 = smul.addr %s301, 8
          %s303 = scalar_lea.vmem [#allocation7], %s302
          %304 = dma.done %s300, 128
        $region48: #{tpu_custom_call.1} parent=43 // pred_fallthru
          _
      $region44: #{tpu_custom_call.1} parent=5 // pred_fallthru
        _
    $region6: #{tpu_custom_call.1} parent=1 // loop_footer
      %s21 = sadd.s32 1, %s17
    $region7: #{tpu_custom_call.1} parent=1 // loop_footer_branch
      %16 = sbr.rel target = $region3
    $region8: #{tpu_custom_call.1} parent=1 // loop_exit
      _
    %305 = vsyncpa [#allocation3], 1
    %s306 = scalar_lea.sflag [#allocation3], 1
    %307 = vsyncpa %s306, 1
    %308 = vsyncpa [#allocation6], 1
    %s309 = scalar_lea.sflag [#allocation6], 1
    %310 = vsyncpa %s309, 1
    %311 = vsyncpa [#allocation4], 1
    %s312 = scalar_lea.sflag [#allocation4], 1
    %313 = vsyncpa %s312, 1

</llo_original>
